<compile_context>
chip_gen: v5e
topology: v5e:2x2
jax: 0.10.0
libtpu: 0.0.40
codegen_flags: <defaults>
</compile_context>

<pallas_src>
import functools

import jax
import jax.numpy as jnp
from jax.experimental import pallas as pl
from jax.experimental.pallas import tpu as pltpu

H = W = 16
C_IN = 3
C_HID = 32
N_RAYS = 32
PROB_THRESH = 0.5

K_PAD = 32            # 9*C_IN = 27 taps, zero-padded to 32 lanes
HEAD_PAD = 128        # prob(1) + dist(32) packed into one lane-dense 128-wide slab
MAX_ROW_TILE = 512    # rows of (H*W) per grid step at realistic image sizes


def _stardist_kernel(xp_ref, w1_ref, b1_ref, w2_ref, b2_ref, wh_ref, bh_ref,
                     out_ref):
    # conv 3x3 (C_IN -> C_HID) as im2col matmul + ReLU            [MXU + VPU]
    h = jnp.dot(xp_ref[...], w1_ref[...],
                preferred_element_type=jnp.float32) + b1_ref[...]
    h = jnp.maximum(h, 0.0)
    # conv 1x1 (C_HID -> C_HID) + ReLU                            [MXU + VPU]
    h = jnp.dot(h, w2_ref[...],
                preferred_element_type=jnp.float32) + b2_ref[...]
    h = jnp.maximum(h, 0.0)
    # Fused heads in one MXU push: lane 0 = prob logit (sigmoid on EUP),
    # lanes 1..N_RAYS = dist (linear), remaining lanes are zero padding.
    y = jnp.dot(h, wh_ref[...],
                preferred_element_type=jnp.float32) + bh_ref[...]
    lane = jax.lax.broadcasted_iota(jnp.int32, y.shape, 1)
    out_ref[...] = jnp.where(lane == 0, jax.nn.sigmoid(y), y)


def _im2col3x3(img):
    """(H, W, C) normalized image -> (H*W, 9*C) patches with zero padding."""
    h, w, c = img.shape
    pad = jnp.pad(img, ((1, 1), (1, 1), (0, 0)))
    taps = [pad[dy:dy + h, dx:dx + w, :] for dy in range(3) for dx in range(3)]
    return jnp.concatenate(taps, axis=-1).reshape(h * w, 9 * c)


def init_params(key):
    """Deterministic synthetic weights (StarDist2D checkpoint is not loadable)."""
    ks = jax.random.split(key, 4)
    return dict(
        w1=jax.random.normal(ks[0], (9 * C_IN, C_HID), jnp.float32) * 0.1,
        b1=jnp.zeros((1, C_HID), jnp.float32),
        w2=jax.random.normal(ks[1], (C_HID, C_HID), jnp.float32) * 0.1,
        b2=jnp.zeros((1, C_HID), jnp.float32),
        wp=jax.random.normal(ks[2], (C_HID, 1), jnp.float32) * 0.1,
        bp=jnp.zeros((1, 1), jnp.float32),
        wd=jax.random.normal(ks[3], (C_HID, N_RAYS), jnp.float32) * 0.1,
        bd=jnp.zeros((1, N_RAYS), jnp.float32),
    )


@functools.partial(jax.jit, static_argnames=("normalize",))
def stardist_forward(x_nchw, params, normalize=True):
    # mirrors torch: x.squeeze(0).permute(1, 2, 0) -> (H, W, C)
    img = jnp.transpose(x_nchw[0], (1, 2, 0)).astype(jnp.float32)
    h, w, c = img.shape

    # csbdeep normalize(): global percentile affine (pmin=1, pmax=99.8),
    # applied BEFORE zero-padding/im2col so padded conv taps stay exactly 0.
    if normalize:
        mi = jnp.percentile(img, 1.0)
        ma = jnp.percentile(img, 99.8)
        img = (img - mi) / (ma - mi + 1e-20)

    x_patches = _im2col3x3(img)                              # (H*W, 27)
    k = x_patches.shape[1]
    x_patches = jnp.pad(x_patches, ((0, 0), (0, K_PAD - k)))  # pad K -> 32
    w1 = jnp.pad(params["w1"], ((0, K_PAD - k), (0, 0)))

    # Fuse prob + dist heads into one lane-dense weight/bias (C_HID, 128).
    wh = jnp.concatenate([params["wp"], params["wd"]], axis=1)
    bh = jnp.concatenate([params["bp"], params["bd"]], axis=1)
    n_head = wh.shape[1]
    wh = jnp.pad(wh, ((0, 0), (0, HEAD_PAD - n_head)))
    bh = jnp.pad(bh, ((0, 0), (0, HEAD_PAD - n_head)))

    n_rows = h * w
    row_tile = min(MAX_ROW_TILE, n_rows)   # single grid step at 16x16
    assert n_rows % row_tile == 0
    grid = (n_rows // row_tile,)

    def full_spec(shp):
        return pl.BlockSpec(shp, lambda i: (0, 0))

    out = pl.pallas_call(
        _stardist_kernel,
        out_shape=jax.ShapeDtypeStruct((n_rows, HEAD_PAD), jnp.float32),
        grid=grid,
        in_specs=[
            pl.BlockSpec((row_tile, K_PAD), lambda i: (i, 0)),
            full_spec((K_PAD, C_HID)), full_spec((1, C_HID)),
            full_spec((C_HID, C_HID)), full_spec((1, C_HID)),
            full_spec((C_HID, HEAD_PAD)), full_spec((1, HEAD_PAD)),
        ],
        out_specs=pl.BlockSpec((row_tile, HEAD_PAD), lambda i: (i, 0)),
        compiler_params=pltpu.CompilerParams(
            dimension_semantics=("parallel",),
            vmem_limit_bytes=32 * 1024 * 1024),
    )(x_patches, w1, params["b1"], params["w2"], params["b2"], wh, bh)

    prob = out[:, 0].reshape(h, w)
    dist = out[:, 1:1 + N_RAYS].reshape(h, w, N_RAYS)
    # TODO(synk): predict_instances' star-polygon NMS + instance-label
    # rendering is data-dependent/host-side in StarDist; masks here are the
    # foreground thresholding of the prob map (fused by XLA, zero extra DMA).
    masks = (prob > PROB_THRESH).astype(jnp.int32)
    return masks, prob, dist


if __name__ == "__main__":
    key = jax.random.PRNGKey(0)
    k_img, k_par = jax.random.split(key)
    # NCHW like the PyTorch module (batch must be 1 because of squeeze(0)).
    x = jax.random.uniform(k_img, (1, C_IN, H, W), jnp.float32)
    params = init_params(k_par)

    masks, prob, dist = stardist_forward(x, params, normalize=True)
    jax.block_until_ready((masks, prob, dist))

    assert masks.shape == (H, W) and masks.dtype == jnp.int32
    assert prob.shape == (H, W) and dist.shape == (H, W, N_RAYS)
    print("KERNEL_OK")
</pallas_src>

<mosaic_0001>
module attributes {stable_mosaic.version = 11 : i64} {
  func.func @_stardist_kernel(%arg0: i32, %arg1: memref<256x32xf32, #tpu.memory_space<vmem>>, %arg2: memref<32x32xf32, #tpu.memory_space<vmem>>, %arg3: memref<1x32xf32, #tpu.memory_space<vmem>>, %arg4: memref<32x32xf32, #tpu.memory_space<vmem>>, %arg5: memref<1x32xf32, #tpu.memory_space<vmem>>, %arg6: memref<32x128xf32, #tpu.memory_space<vmem>>, %arg7: memref<1x128xf32, #tpu.memory_space<vmem>>, %arg8: memref<256x128xf32, #tpu.memory_space<vmem>>) attributes {dimension_semantics = [#tpu.dimension_semantics<parallel>], iteration_bounds = array<i64: 1>, scalar_prefetch = 0 : i64, scratch_operands = 0 : i64, tpu.core_type = #tpu.core_type<tc>, window_params = [{transform_indices = @transform_0, window_bounds = array<i64: 256, 32>}, {pipeline_mode = #tpu.pipeline_mode<synchronous>, transform_indices = @transform_1, window_bounds = array<i64: 32, 32>}, {pipeline_mode = #tpu.pipeline_mode<synchronous>, transform_indices = @transform_2, window_bounds = array<i64: 1, 32>}, {pipeline_mode = #tpu.pipeline_mode<synchronous>, transform_indices = @transform_3, window_bounds = array<i64: 32, 32>}, {pipeline_mode = #tpu.pipeline_mode<synchronous>, transform_indices = @transform_4, window_bounds = array<i64: 1, 32>}, {pipeline_mode = #tpu.pipeline_mode<synchronous>, transform_indices = @transform_5, window_bounds = array<i64: 32, 128>}, {pipeline_mode = #tpu.pipeline_mode<synchronous>, transform_indices = @transform_6, window_bounds = array<i64: 1, 128>}, {transform_indices = @transform_7, window_bounds = array<i64: 256, 128>}]} {
    %c0 = arith.constant 0 : index
    %c0_0 = arith.constant 0 : index
    %0 = vector.load %arg1[%c0, %c0_0] : memref<256x32xf32, #tpu.memory_space<vmem>>, vector<256x32xf32>
    %c0_1 = arith.constant 0 : index
    %c0_2 = arith.constant 0 : index
    %1 = vector.load %arg2[%c0_1, %c0_2] : memref<32x32xf32, #tpu.memory_space<vmem>>, vector<32x32xf32>
    %cst = arith.constant dense<0.000000e+00> : vector<256x32xf32>
    %2 = tpu.matmul %0, %1, %cst {dimension_numbers = #tpu.dot_dimension_numbers<[1], [0], [0], [1], [0, 0, 1, 1], [], []>} : vector<256x32xf32>, vector<32x32xf32>, vector<256x32xf32> -> vector<256x32xf32>
    %c0_3 = arith.constant 0 : index
    %c0_4 = arith.constant 0 : index
    %3 = vector.load %arg3[%c0_3, %c0_4] : memref<1x32xf32, #tpu.memory_space<vmem>>, vector<1x32xf32>
    %4 = vector.broadcast %3 : vector<1x32xf32> to vector<256x32xf32>
    %5 = arith.addf %2, %4 : vector<256x32xf32>
    %cst_5 = arith.constant 0.000000e+00 : f32
    %6 = vector.broadcast %cst_5 : f32 to vector<256x32xf32>
    %7 = arith.maximumf %5, %6 : vector<256x32xf32>
    %c0_6 = arith.constant 0 : index
    %c0_7 = arith.constant 0 : index
    %8 = vector.load %arg4[%c0_6, %c0_7] : memref<32x32xf32, #tpu.memory_space<vmem>>, vector<32x32xf32>
    %cst_8 = arith.constant dense<0.000000e+00> : vector<256x32xf32>
    %9 = tpu.matmul %7, %8, %cst_8 {dimension_numbers = #tpu.dot_dimension_numbers<[1], [0], [0], [1], [0, 0, 1, 1], [], []>} : vector<256x32xf32>, vector<32x32xf32>, vector<256x32xf32> -> vector<256x32xf32>
    %c0_9 = arith.constant 0 : index
    %c0_10 = arith.constant 0 : index
    %10 = vector.load %arg5[%c0_9, %c0_10] : memref<1x32xf32, #tpu.memory_space<vmem>>, vector<1x32xf32>
    %11 = vector.broadcast %10 : vector<1x32xf32> to vector<256x32xf32>
    %12 = arith.addf %9, %11 : vector<256x32xf32>
    %cst_11 = arith.constant 0.000000e+00 : f32
    %13 = vector.broadcast %cst_11 : f32 to vector<256x32xf32>
    %14 = arith.maximumf %12, %13 : vector<256x32xf32>
    %c0_12 = arith.constant 0 : index
    %c0_13 = arith.constant 0 : index
    %15 = vector.load %arg6[%c0_12, %c0_13] : memref<32x128xf32, #tpu.memory_space<vmem>>, vector<32x128xf32>
    %cst_14 = arith.constant dense<0.000000e+00> : vector<256x128xf32>
    %16 = tpu.matmul %14, %15, %cst_14 {dimension_numbers = #tpu.dot_dimension_numbers<[1], [0], [0], [1], [0, 0, 1, 1], [], []>} : vector<256x32xf32>, vector<32x128xf32>, vector<256x128xf32> -> vector<256x128xf32>
    %c0_15 = arith.constant 0 : index
    %c0_16 = arith.constant 0 : index
    %17 = vector.load %arg7[%c0_15, %c0_16] : memref<1x128xf32, #tpu.memory_space<vmem>>, vector<1x128xf32>
    %18 = vector.broadcast %17 : vector<1x128xf32> to vector<256x128xf32>
    %19 = arith.addf %16, %18 : vector<256x128xf32>
    %20 = tpu.iota {dimensions = array<i32: 1>} : vector<256x128xi32>
    %c0_i32 = arith.constant 0 : i32
    %21 = vector.broadcast %c0_i32 : i32 to vector<256x128xi32>
    %22 = arith.cmpi eq, %20, %21 : vector<256x128xi32>
    %23 = arith.negf %19 : vector<256x128xf32>
    %24 = math.exp %23 : vector<256x128xf32>
    %cst_17 = arith.constant 1.000000e+00 : f32
    %25 = vector.broadcast %cst_17 : f32 to vector<256x128xf32>
    %26 = arith.addf %25, %24 : vector<256x128xf32>
    %27 = arith.divf %25, %26 : vector<256x128xf32>
    %28 = arith.select %22, %27, %19 : vector<256x128xi1>, vector<256x128xf32>
    %c0_18 = arith.constant 0 : index
    %c0_19 = arith.constant 0 : index
    %29 = vector.load %arg8[%c0_18, %c0_19] : memref<256x128xf32, #tpu.memory_space<vmem>>, vector<256x128xf32>
    tpu.vector_store %arg8[%c0_18, %c0_19], %28 {strides = array<i32>} : memref<256x128xf32, #tpu.memory_space<vmem>>, vector<256x128xf32>,
    return
  }
  func.func @transform_0(%arg0: i32) -> (i32, i32) {
    %c0_i32 = arith.constant 0 : i32
    %c0_i32_0 = arith.constant 0 : i32
    return %arg0, %c0_i32 : i32, i32
  }
  func.func @transform_1(%arg0: i32) -> (i32, i32) {
    %c0_i32 = arith.constant 0 : i32
    %c0_i32_0 = arith.constant 0 : i32
    %c0_i32_1 = arith.constant 0 : i32
    return %c0_i32, %c0_i32_0 : i32, i32
  }
  func.func @transform_2(%arg0: i32) -> (i32, i32) {
    %c0_i32 = arith.constant 0 : i32
    %c0_i32_0 = arith.constant 0 : i32
    %c0_i32_1 = arith.constant 0 : i32
    return %c0_i32, %c0_i32_0 : i32, i32
  }
  func.func @transform_3(%arg0: i32) -> (i32, i32) {
    %c0_i32 = arith.constant 0 : i32
    %c0_i32_0 = arith.constant 0 : i32
    %c0_i32_1 = arith.constant 0 : i32
    return %c0_i32, %c0_i32_0 : i32, i32
  }
  func.func @transform_4(%arg0: i32) -> (i32, i32) {
    %c0_i32 = arith.constant 0 : i32
    %c0_i32_0 = arith.constant 0 : i32
    %c0_i32_1 = arith.constant 0 : i32
    return %c0_i32, %c0_i32_0 : i32, i32
  }
  func.func @transform_5(%arg0: i32) -> (i32, i32) {
    %c0_i32 = arith.constant 0 : i32
    %c0_i32_0 = arith.constant 0 : i32
    %c0_i32_1 = arith.constant 0 : i32
    return %c0_i32, %c0_i32_0 : i32, i32
  }
  func.func @transform_6(%arg0: i32) -> (i32, i32) {
    %c0_i32 = arith.constant 0 : i32
    %c0_i32_0 = arith.constant 0 : i32
    %c0_i32_1 = arith.constant 0 : i32
    return %c0_i32, %c0_i32_0 : i32, i32
  }
  func.func @transform_7(%arg0: i32) -> (i32, i32) {
    %c0_i32 = arith.constant 0 : i32
    %c0_i32_0 = arith.constant 0 : i32
    return %arg0, %c0_i32 : i32, i32
  }
}

</mosaic_0001>

<llo_original>
// kernel: squeeze.3
$region0: #{squeeze.3}
  %s0 = inlined_call_operand.vmem [shape: f32[256], index: 0, kind: input, shape index: {}]
  %s1 = inlined_call_operand.vmem [shape: f32[16,16], index: 1, kind: output, shape index: {}]
  $region1: #{squeeze.3} parent=0
    #allocation0 [shape = 'u8[4096]{0}', space=vmem, size = 0x1000, scoped, tag = 'scoped mem for input reshape']
    %s3 = ssub.s32 4, 1
    %v4 = vld [vmem:[%s0] sm:%s3]
    %5 = vst [vmem:[#allocation0] sm:%s3] %v4
    %v6 = vld [vmem:[#allocation0] sm:$0x3]
    %vm7 = vcmask 130048
    %8 = vst.msk [vmem:[%s1] ss:$8 sm:$0x3] %vm7, %v6
    %v9 = vld [vmem:[#allocation0] sm:$0x3]
    %10 = vrot.lane.b32.xlu0 %v9, 112
    %v11 = vpop.permute.xlu0 %10
    %vm12 = vcmask 130048
    %s13 = scalar_lea.vmem %s1, 1
    %14 = vst.msk [vmem:[%s13] ss:$8 sm:$0x3] %vm12, %v11
    %v15 = vld [vmem:[#allocation0] sm:$0x3]
    %16 = vrot.lane.b32.xlu0 %v15, 96
    %v17 = vpop.permute.xlu0 %16
    %vm18 = vcmask 130048
    %s19 = scalar_lea.vmem %s1, 2
    %20 = vst.msk [vmem:[%s19] ss:$8 sm:$0x3] %vm18, %v17
    %v21 = vld [vmem:[#allocation0] sm:$0x3]
    %22 = vrot.lane.b32.xlu0 %v21, 80
    %v23 = vpop.permute.xlu0 %22
    %vm24 = vcmask 130048
    %s25 = scalar_lea.vmem %s1, 3
    %26 = vst.msk [vmem:[%s25] ss:$8 sm:$0x3] %vm24, %v23
    %v27 = vld [vmem:[#allocation0] sm:$0x3]
    %28 = vrot.lane.b32.xlu0 %v27, 64
    %v29 = vpop.permute.xlu0 %28
    %vm30 = vcmask 130048
    %s31 = scalar_lea.vmem %s1, 4
    %32 = vst.msk [vmem:[%s31] ss:$8 sm:$0x3] %vm30, %v29
    %v33 = vld [vmem:[#allocation0] sm:$0x3]
    %34 = vrot.lane.b32.xlu0 %v33, 48
    %v35 = vpop.permute.xlu0 %34
    %vm36 = vcmask 130048
    %s37 = scalar_lea.vmem %s1, 5
    %38 = vst.msk [vmem:[%s37] ss:$8 sm:$0x3] %vm36, %v35
    %v39 = vld [vmem:[#allocation0] sm:$0x3]
    %40 = vrot.lane.b32.xlu0 %v39, 32
    %v41 = vpop.permute.xlu0 %40
    %vm42 = vcmask 130048
    %s43 = scalar_lea.vmem %s1, 6
    %44 = vst.msk [vmem:[%s43] ss:$8 sm:$0x3] %vm42, %v41
    %v45 = vld [vmem:[#allocation0] sm:$0x3]
    %46 = vrot.lane.b32.xlu0 %v45, 16
    %v47 = vpop.permute.xlu0 %46
    %vm48 = vcmask 130048
    %s49 = scalar_lea.vmem %s1, 7
    %50 = vst.msk [vmem:[%s49] ss:$8 sm:$0x3] %vm48, %v47

// kernel: stardist_forward.1
$region0: #{stardist_forward.1}
  #allocation0 [shape = 'u32[]', space=smem, size = 0x4, offset = 0x4, fixed_abs, tag = 'smem constant byte address 0x4 - core index']
  #allocation1 [shape = 'u32[72,128]{1,0:T(1,128)}', space=vmem, size = 0x9000, scoped, tag = 'internal scratch']
  %s0 = inlined_call_operand.vmem [shape: f32[256,32], index: 0, kind: input, shape index: {}]
  %s1 = inlined_call_operand.vmem [shape: f32[32,32], index: 1, kind: input, shape index: {}]
  %s2 = inlined_call_operand.vmem [shape: f32[1,32], index: 2, kind: input, shape index: {}]
  %s3 = inlined_call_operand.vmem [shape: f32[32,32], index: 3, kind: input, shape index: {}]
  %s4 = inlined_call_operand.vmem [shape: f32[1,32], index: 4, kind: input, shape index: {}]
  %s5 = inlined_call_operand.vmem [shape: f32[32,128], index: 5, kind: input, shape index: {}]
  %s6 = inlined_call_operand.vmem [shape: f32[1,128], index: 6, kind: input, shape index: {}]
  %s7 = inlined_call_operand.vmem [shape: f32[256,128], index: 7, kind: output, shape index: {}]
  %s8 = sld [smem:[#allocation0]]
  $region38: #{stardist_forward.1} parent=0
    _
  %s10 = ssub.s32 1, %s8
  %s11 = scalar_select 0, %s10, %s8
  // Predicated region
  $region2: #{stardist_forward.1} parent=0 // pred_check
    _
  $region3: #{stardist_forward.1} parent=0 // pred_check_branch
    %13 = sbr.rel (0) target = $region5
  $region4: #{stardist_forward.1} parent=0 // pred_region
    _
  $region5: #{stardist_forward.1} parent=0 // pred_fallthru
    _
  // Predicated region
  $region6: #{stardist_forward.1} parent=0 // pred_check
    _
  $region7: #{stardist_forward.1} parent=0 // pred_check_branch
    %15 = sbr.rel (0) target = $region9
  $region8: #{stardist_forward.1} parent=0 // pred_region
    _
  $region9: #{stardist_forward.1} parent=0 // pred_fallthru
    _
  // Predicated region
  $region10: #{stardist_forward.1} parent=0 // pred_check
    _
  $region11: #{stardist_forward.1} parent=0 // pred_check_branch
    %17 = sbr.rel (0) target = $region13
  $region12: #{stardist_forward.1} parent=0 // pred_region
    _
  $region13: #{stardist_forward.1} parent=0 // pred_fallthru
    _
  // Predicated region
  $region14: #{stardist_forward.1} parent=0 // pred_check
    _
  $region15: #{stardist_forward.1} parent=0 // pred_check_branch
    %19 = sbr.rel (0) target = $region17
  $region16: #{stardist_forward.1} parent=0 // pred_region
    _
  $region17: #{stardist_forward.1} parent=0 // pred_fallthru
    _
  // Predicated region
  $region18: #{stardist_forward.1} parent=0 // pred_check
    _
  $region19: #{stardist_forward.1} parent=0 // pred_check_branch
    %21 = sbr.rel (0) target = $region21
  $region20: #{stardist_forward.1} parent=0 // pred_region
    _
  $region21: #{stardist_forward.1} parent=0 // pred_fallthru
    _
  // Predicated region
  $region22: #{stardist_forward.1} parent=0 // pred_check
    _
  $region23: #{stardist_forward.1} parent=0 // pred_check_branch
    %23 = sbr.rel (0) target = $region25
  $region24: #{stardist_forward.1} parent=0 // pred_region
    _
  $region25: #{stardist_forward.1} parent=0 // pred_fallthru
    _
  // Predicated region
  $region26: #{stardist_forward.1} parent=0 // pred_check
    _
  $region27: #{stardist_forward.1} parent=0 // pred_check_branch
    %25 = sbr.rel (0) target = $region29
  $region28: #{stardist_forward.1} parent=0 // pred_region
    _
  $region29: #{stardist_forward.1} parent=0 // pred_fallthru
    _
  %v26 = vld [vmem:[%s0] sm:$0xff]
  %v27 = vld [vmem:[%s0 + $0x8] sm:$0xff]
  %v28 = vld [vmem:[%s0 + $0x10] sm:$0xff]
  %v29 = vld [vmem:[%s0 + $0x18] sm:$0xff]
  %v30 = vld [vmem:[%s0 + $0x20] sm:$0xff]
  %v31 = vld [vmem:[%s0 + $0x28] sm:$0xff]
  %v32 = vld [vmem:[%s0 + $0x30] sm:$0xff]
  %v33 = vld [vmem:[%s0 + $0x38] sm:$0xff]
  %v34 = vld [vmem:[%s0 + $0x40] sm:$0xff]
  %v35 = vld [vmem:[%s0 + $0x48] sm:$0xff]
  %v36 = vld [vmem:[%s0 + $0x50] sm:$0xff]
  %v37 = vld [vmem:[%s0 + $0x58] sm:$0xff]
  %v38 = vld [vmem:[%s0 + $0x60] sm:$0xff]
  %v39 = vld [vmem:[%s0 + $0x68] sm:$0xff]
  %v40 = vld [vmem:[%s0 + $0x70] sm:$0xff]
  %v41 = vld [vmem:[%s0 + $0x78] sm:$0xff]
  %v42 = vld [vmem:[%s0 + $0x80] sm:$0xff]
  %v43 = vld [vmem:[%s0 + $0x88] sm:$0xff]
  %v44 = vld [vmem:[%s0 + $0x90] sm:$0xff]
  %v45 = vld [vmem:[%s0 + $0x98] sm:$0xff]
  %v46 = vld [vmem:[%s0 + $0xa0] sm:$0xff]
  %v47 = vld [vmem:[%s0 + $0xa8] sm:$0xff]
  %v48 = vld [vmem:[%s0 + $0xb0] sm:$0xff]
  %v49 = vld [vmem:[%s0 + $0xb8] sm:$0xff]
  %v50 = vld [vmem:[%s0 + $0xc0] sm:$0xff]
  %v51 = vld [vmem:[%s0 + $0xc8] sm:$0xff]
  %v52 = vld [vmem:[%s0 + $0xd0] sm:$0xff]
  %v53 = vld [vmem:[%s0 + $0xd8] sm:$0xff]
  %v54 = vld [vmem:[%s0 + $0xe0] sm:$0xff]
  %v55 = vld [vmem:[%s0 + $0xe8] sm:$0xff]
  %v56 = vld [vmem:[%s0 + $0xf0] sm:$0xff]
  %v57 = vld [vmem:[%s0 + $0xf8] sm:$0xff]
  %v58 = vld [vmem:[%s1] sm:$0xff]
  %v59 = vld [vmem:[%s1 + $0x8] sm:$0xff]
  %v60 = vld [vmem:[%s1 + $0x10] sm:$0xff]
  %v61 = vld [vmem:[%s1 + $0x18] sm:$0xff]
  %v62 = vld [vmem:[%s2] sm:$0x1]
  %v64 = vperm.slane %v62, 0
  %vm66 = vcmask 261120
  %v68 = vsel %vm66, %v26, 0
  %v71 = vsel %vm66, %v27, 0
  %v74 = vsel %vm66, %v28, 0
  %v77 = vsel %vm66, %v29, 0
  %v80 = vsel %vm66, %v30, 0
  %v83 = vsel %vm66, %v31, 0
  %v86 = vsel %vm66, %v32, 0
  %v89 = vsel %vm66, %v33, 0
  %v92 = vsel %vm66, %v34, 0
  %v95 = vsel %vm66, %v35, 0
  %v98 = vsel %vm66, %v36, 0
  %v101 = vsel %vm66, %v37, 0
  %v104 = vsel %vm66, %v38, 0
  %v107 = vsel %vm66, %v39, 0
  %v110 = vsel %vm66, %v40, 0
  %v113 = vsel %vm66, %v41, 0
  %v116 = vsel %vm66, %v42, 0
  %v119 = vsel %vm66, %v43, 0
  %v122 = vsel %vm66, %v44, 0
  %v125 = vsel %vm66, %v45, 0
  %v128 = vsel %vm66, %v46, 0
  %v131 = vsel %vm66, %v47, 0
  %v134 = vsel %vm66, %v48, 0
  %v137 = vsel %vm66, %v49, 0
  %v140 = vsel %vm66, %v50, 0
  %v143 = vsel %vm66, %v51, 0
  %v146 = vsel %vm66, %v52, 0
  %v149 = vsel %vm66, %v53, 0
  %v152 = vsel %vm66, %v54, 0
  %v155 = vsel %vm66, %v55, 0
  %v158 = vsel %vm66, %v56, 0
  %v161 = vsel %vm66, %v57, 0
  %163 = vmatpush.msra.mxu0 0.0
  %164 = vmatpush.msra.mxu0 0.0
  %165 = vmatpush.msra.mxu0 0.0
  %166 = vmatpush.msra.mxu0 0.0
  %167 = vmatpush.msra.mxu0 0.0
  %168 = vmatpush.msra.mxu0 0.0
  %169 = vmatpush.msra.mxu0 0.0
  %170 = vmatpush.msra.mxu0 0.0
  %171 = vmatpush.msra.mxu0 0.0
  %172 = vmatpush.msra.mxu0 0.0
  %173 = vmatpush.msra.mxu0 0.0
  %174 = vmatpush.msra.mxu0 0.0
  %175 = vmatpush.msra.mxu0 %v61
  %176 = vmatpush.msra.mxu0 %v60
  %177 = vmatpush.msra.mxu0 %v59
  %178 = vmatpush.msra.mxu0 %v58
  %179 = vmatmul.f32.gmra.mxu0 %v68
  %v180 = vpop.f32.mrf.mxu0
  %v181 = vadd.f32 %v64, %v180
  %182 = vmatmul.f32.gmra.mxu0 %v71
  %v183 = vpop.f32.mrf.mxu0
  %v184 = vadd.f32 %v64, %v183
  %185 = vmatmul.f32.gmra.mxu0 %v74
  %v186 = vpop.f32.mrf.mxu0
  %v187 = vadd.f32 %v64, %v186
  %188 = vmatmul.f32.gmra.mxu0 %v77
  %v189 = vpop.f32.mrf.mxu0
  %v190 = vadd.f32 %v64, %v189
  %191 = vmatmul.f32.gmra.mxu0 %v80
  %v192 = vpop.f32.mrf.mxu0
  %v193 = vadd.f32 %v64, %v192
  %194 = vmatmul.f32.gmra.mxu0 %v83
  %v195 = vpop.f32.mrf.mxu0
  %v196 = vadd.f32 %v64, %v195
  %197 = vmatmul.f32.gmra.mxu0 %v86
  %v198 = vpop.f32.mrf.mxu0
  %v199 = vadd.f32 %v64, %v198
  %200 = vmatmul.f32.gmra.mxu0 %v89
  %v201 = vpop.f32.mrf.mxu0
  %v202 = vadd.f32 %v64, %v201
  %203 = vmatmul.f32.gmra.mxu0 %v92
  %v204 = vpop.f32.mrf.mxu0
  %v205 = vadd.f32 %v64, %v204
  %206 = vmatmul.f32.gmra.mxu0 %v95
  %v207 = vpop.f32.mrf.mxu0
  %v208 = vadd.f32 %v64, %v207
  %209 = vmatmul.f32.gmra.mxu0 %v98
  %v210 = vpop.f32.mrf.mxu0
  %v211 = vadd.f32 %v64, %v210
  %212 = vmatmul.f32.gmra.mxu0 %v101
  %v213 = vpop.f32.mrf.mxu0
  %v214 = vadd.f32 %v64, %v213
  %215 = vmatmul.f32.gmra.mxu0 %v104
  %v216 = vpop.f32.mrf.mxu0
  %v217 = vadd.f32 %v64, %v216
  %218 = vmatmul.f32.gmra.mxu0 %v107
  %v219 = vpop.f32.mrf.mxu0
  %v220 = vadd.f32 %v64, %v219
  %221 = vmatmul.f32.gmra.mxu0 %v110
  %v222 = vpop.f32.mrf.mxu0
  %v223 = vadd.f32 %v64, %v222
  %224 = vmatmul.f32.gmra.mxu0 %v113
  %v225 = vpop.f32.mrf.mxu0
  %v226 = vadd.f32 %v64, %v225
  %227 = vmatmul.f32.gmra.mxu0 %v116
  %v228 = vpop.f32.mrf.mxu0
  %v229 = vadd.f32 %v64, %v228
  %230 = vmatmul.f32.gmra.mxu0 %v119
  %v231 = vpop.f32.mrf.mxu0
  %v232 = vadd.f32 %v64, %v231
  %233 = vmatmul.f32.gmra.mxu0 %v122
  %v234 = vpop.f32.mrf.mxu0
  %v235 = vadd.f32 %v64, %v234
  %236 = vmatmul.f32.gmra.mxu0 %v125
  %v237 = vpop.f32.mrf.mxu0
  %v238 = vadd.f32 %v64, %v237
  %239 = vmatmul.f32.gmra.mxu0 %v128
  %v240 = vpop.f32.mrf.mxu0
  %v241 = vadd.f32 %v64, %v240
  %242 = vmatmul.f32.gmra.mxu0 %v131
  %v243 = vpop.f32.mrf.mxu0
  %v244 = vadd.f32 %v64, %v243
  %245 = vmatmul.f32.gmra.mxu0 %v134
  %v246 = vpop.f32.mrf.mxu0
  %v247 = vadd.f32 %v64, %v246
  %248 = vmatmul.f32.gmra.mxu0 %v137
  %v249 = vpop.f32.mrf.mxu0
  %v250 = vadd.f32 %v64, %v249
  %251 = vmatmul.f32.gmra.mxu0 %v140
  %v252 = vpop.f32.mrf.mxu0
  %v253 = vadd.f32 %v64, %v252
  %254 = vmatmul.f32.gmra.mxu0 %v143
  %v255 = vpop.f32.mrf.mxu0
  %v256 = vadd.f32 %v64, %v255
  %257 = vmatmul.f32.gmra.mxu0 %v146
  %v258 = vpop.f32.mrf.mxu0
  %v259 = vadd.f32 %v64, %v258
  %260 = vmatmul.f32.gmra.mxu0 %v149
  %v261 = vpop.f32.mrf.mxu0
  %v262 = vadd.f32 %v64, %v261
  %263 = vmatmul.f32.gmra.mxu0 %v152
  %v264 = vpop.f32.mrf.mxu0
  %v265 = vadd.f32 %v64, %v264
  %266 = vmatmul.f32.gmra.mxu0 %v155
  %v267 = vpop.f32.mrf.mxu0
  %v268 = vadd.f32 %v64, %v267
  %269 = vmatmul.f32.gmra.mxu0 %v158
  %v270 = vpop.f32.mrf.mxu0
  %v271 = vadd.f32 %v64, %v270
  %272 = vmatmul.f32.gmra.mxu0 %v161
  %v273 = vpop.f32.mrf.mxu0
  %v274 = vadd.f32 %v64, %v273
  %275 = vdwg.mxu0
  %v276 = vmax.f32 %v181, 0.0
  %v277 = vmax.f32 %v184, 0.0
  %v278 = vmax.f32 %v187, 0.0
  %v279 = vmax.f32 %v190, 0.0
  %v280 = vmax.f32 %v193, 0.0
  %v281 = vmax.f32 %v196, 0.0
  %v282 = vmax.f32 %v199, 0.0
  %v283 = vmax.f32 %v202, 0.0
  %v284 = vmax.f32 %v205, 0.0
  %v285 = vmax.f32 %v208, 0.0
  %v286 = vmax.f32 %v211, 0.0
  %v287 = vmax.f32 %v214, 0.0
  %v288 = vmax.f32 %v217, 0.0
  %v289 = vmax.f32 %v220, 0.0
  %v290 = vmax.f32 %v223, 0.0
  %v291 = vmax.f32 %v226, 0.0
  %v292 = vmax.f32 %v229, 0.0
  %v293 = vmax.f32 %v232, 0.0
  %v294 = vmax.f32 %v235, 0.0
  %v295 = vmax.f32 %v238, 0.0
  %v296 = vmax.f32 %v241, 0.0
  %v297 = vmax.f32 %v244, 0.0
  %v298 = vmax.f32 %v247, 0.0
  %v299 = vmax.f32 %v250, 0.0
  %v300 = vmax.f32 %v253, 0.0
  %v301 = vmax.f32 %v256, 0.0
  %v302 = vmax.f32 %v259, 0.0
  %v303 = vmax.f32 %v262, 0.0
  %v304 = vmax.f32 %v265, 0.0
  %v305 = vmax.f32 %v268, 0.0
  %v306 = vmax.f32 %v271, 0.0
  %v307 = vmax.f32 %v274, 0.0
  %v308 = vld [vmem:[%s3] sm:$0xff]
  %v309 = vld [vmem:[%s3 + $0x8] sm:$0xff]
  %v310 = vld [vmem:[%s3 + $0x10] sm:$0xff]
  %v311 = vld [vmem:[%s3 + $0x18] sm:$0xff]
  %v312 = vld [vmem:[%s4] sm:$0x1]
  %v314 = vperm.slane %v312, 0
  %v317 = vsel %vm66, %v276, 0
  %v320 = vsel %vm66, %v277, 0
  %v323 = vsel %vm66, %v278, 0
  %v326 = vsel %vm66, %v279, 0
  %v329 = vsel %vm66, %v280, 0
  %v332 = vsel %vm66, %v281, 0
  %v335 = vsel %vm66, %v282, 0
  %v338 = vsel %vm66, %v283, 0
  %v341 = vsel %vm66, %v284, 0
  %v344 = vsel %vm66, %v285, 0
  %v347 = vsel %vm66, %v286, 0
  %v350 = vsel %vm66, %v287, 0
  %v353 = vsel %vm66, %v288, 0
  %v356 = vsel %vm66, %v289, 0
  %v359 = vsel %vm66, %v290, 0
  %v362 = vsel %vm66, %v291, 0
  %v365 = vsel %vm66, %v292, 0
  %v368 = vsel %vm66, %v293, 0
  %v371 = vsel %vm66, %v294, 0
  %v374 = vsel %vm66, %v295, 0
  %v377 = vsel %vm66, %v296, 0
  %v380 = vsel %vm66, %v297, 0
  %v383 = vsel %vm66, %v298, 0
  %v386 = vsel %vm66, %v299, 0
  %v389 = vsel %vm66, %v300, 0
  %v392 = vsel %vm66, %v301, 0
  %v395 = vsel %vm66, %v302, 0
  %v398 = vsel %vm66, %v303, 0
  %v401 = vsel %vm66, %v304, 0
  %v404 = vsel %vm66, %v305, 0
  %v407 = vsel %vm66, %v306, 0
  %v410 = vsel %vm66, %v307, 0
  %412 = vmatpush.msra.mxu0 0.0
  %413 = vmatpush.msra.mxu0 0.0
  %414 = vmatpush.msra.mxu0 0.0
  %415 = vmatpush.msra.mxu0 0.0
  %416 = vmatpush.msra.mxu0 0.0
  %417 = vmatpush.msra.mxu0 0.0
  %418 = vmatpush.msra.mxu0 0.0
  %419 = vmatpush.msra.mxu0 0.0
  %420 = vmatpush.msra.mxu0 0.0
  %421 = vmatpush.msra.mxu0 0.0
  %422 = vmatpush.msra.mxu0 0.0
  %423 = vmatpush.msra.mxu0 0.0
  %424 = vmatpush.msra.mxu0 %v311
  %425 = vmatpush.msra.mxu0 %v310
  %426 = vmatpush.msra.mxu0 %v309
  %427 = vmatpush.msra.mxu0 %v308
  %428 = vmatmul.f32.gmra.mxu0 %v317
  %v429 = vpop.f32.mrf.mxu0
  %v430 = vadd.f32 %v314, %v429
  %431 = vmatmul.f32.gmra.mxu0 %v320
  %v432 = vpop.f32.mrf.mxu0
  %v433 = vadd.f32 %v314, %v432
  %434 = vmatmul.f32.gmra.mxu0 %v323
  %v435 = vpop.f32.mrf.mxu0
  %v436 = vadd.f32 %v314, %v435
  %437 = vmatmul.f32.gmra.mxu0 %v326
  %v438 = vpop.f32.mrf.mxu0
  %v439 = vadd.f32 %v314, %v438
  %440 = vmatmul.f32.gmra.mxu0 %v329
  %v441 = vpop.f32.mrf.mxu0
  %v442 = vadd.f32 %v314, %v441
  %443 = vmatmul.f32.gmra.mxu0 %v332
  %v444 = vpop.f32.mrf.mxu0
  %v445 = vadd.f32 %v314, %v444
  %446 = vmatmul.f32.gmra.mxu0 %v335
  %v447 = vpop.f32.mrf.mxu0
  %v448 = vadd.f32 %v314, %v447
  %449 = vmatmul.f32.gmra.mxu0 %v338
  %v450 = vpop.f32.mrf.mxu0
  %v451 = vadd.f32 %v314, %v450
  %452 = vmatmul.f32.gmra.mxu0 %v341
  %v453 = vpop.f32.mrf.mxu0
  %v454 = vadd.f32 %v314, %v453
  %455 = vmatmul.f32.gmra.mxu0 %v344
  %v456 = vpop.f32.mrf.mxu0
  %v457 = vadd.f32 %v314, %v456
  %458 = vmatmul.f32.gmra.mxu0 %v347
  %v459 = vpop.f32.mrf.mxu0
  %v460 = vadd.f32 %v314, %v459
  %461 = vmatmul.f32.gmra.mxu0 %v350
  %v462 = vpop.f32.mrf.mxu0
  %v463 = vadd.f32 %v314, %v462
  %464 = vmatmul.f32.gmra.mxu0 %v353
  %v465 = vpop.f32.mrf.mxu0
  %v466 = vadd.f32 %v314, %v465
  %467 = vmatmul.f32.gmra.mxu0 %v356
  %v468 = vpop.f32.mrf.mxu0
  %v469 = vadd.f32 %v314, %v468
  %470 = vmatmul.f32.gmra.mxu0 %v359
  %v471 = vpop.f32.mrf.mxu0
  %v472 = vadd.f32 %v314, %v471
  %473 = vmatmul.f32.gmra.mxu0 %v362
  %v474 = vpop.f32.mrf.mxu0
  %v475 = vadd.f32 %v314, %v474
  %476 = vmatmul.f32.gmra.mxu0 %v365
  %v477 = vpop.f32.mrf.mxu0
  %v478 = vadd.f32 %v314, %v477
  %479 = vmatmul.f32.gmra.mxu0 %v368
  %v480 = vpop.f32.mrf.mxu0
  %v481 = vadd.f32 %v314, %v480
  %482 = vmatmul.f32.gmra.mxu0 %v371
  %v483 = vpop.f32.mrf.mxu0
  %v484 = vadd.f32 %v314, %v483
  %485 = vmatmul.f32.gmra.mxu0 %v374
  %v486 = vpop.f32.mrf.mxu0
  %v487 = vadd.f32 %v314, %v486
  %488 = vmatmul.f32.gmra.mxu0 %v377
  %v489 = vpop.f32.mrf.mxu0
  %v490 = vadd.f32 %v314, %v489
  %491 = vmatmul.f32.gmra.mxu0 %v380
  %v492 = vpop.f32.mrf.mxu0
  %v493 = vadd.f32 %v314, %v492
  %494 = vmatmul.f32.gmra.mxu0 %v383
  %v495 = vpop.f32.mrf.mxu0
  %v496 = vadd.f32 %v314, %v495
  %497 = vmatmul.f32.gmra.mxu0 %v386
  %v498 = vpop.f32.mrf.mxu0
  %v499 = vadd.f32 %v314, %v498
  %500 = vmatmul.f32.gmra.mxu0 %v389
  %v501 = vpop.f32.mrf.mxu0
  %v502 = vadd.f32 %v314, %v501
  %503 = vmatmul.f32.gmra.mxu0 %v392
  %v504 = vpop.f32.mrf.mxu0
  %v505 = vadd.f32 %v314, %v504
  %506 = vmatmul.f32.gmra.mxu0 %v395
  %v507 = vpop.f32.mrf.mxu0
  %v508 = vadd.f32 %v314, %v507
  %509 = vmatmul.f32.gmra.mxu0 %v398
  %v510 = vpop.f32.mrf.mxu0
  %v511 = vadd.f32 %v314, %v510
  %512 = vmatmul.f32.gmra.mxu0 %v401
  %v513 = vpop.f32.mrf.mxu0
  %v514 = vadd.f32 %v314, %v513
  %515 = vmatmul.f32.gmra.mxu0 %v404
  %v516 = vpop.f32.mrf.mxu0
  %v517 = vadd.f32 %v314, %v516
  %518 = vmatmul.f32.gmra.mxu0 %v407
  %v519 = vpop.f32.mrf.mxu0
  %v520 = vadd.f32 %v314, %v519
  %521 = vmatmul.f32.gmra.mxu0 %v410
  %v522 = vpop.f32.mrf.mxu0
  %v523 = vadd.f32 %v314, %v522
  %524 = vdwg.mxu0
  %v525 = vmax.f32 %v430, 0.0
  %v526 = vmax.f32 %v433, 0.0
  %v527 = vmax.f32 %v436, 0.0
  %v528 = vmax.f32 %v439, 0.0
  %v529 = vmax.f32 %v442, 0.0
  %v530 = vmax.f32 %v445, 0.0
  %v531 = vmax.f32 %v448, 0.0
  %v532 = vmax.f32 %v451, 0.0
  %v533 = vmax.f32 %v454, 0.0
  %v534 = vmax.f32 %v457, 0.0
  %v535 = vmax.f32 %v460, 0.0
  %v536 = vmax.f32 %v463, 0.0
  %v537 = vmax.f32 %v466, 0.0
  %v538 = vmax.f32 %v469, 0.0
  %v539 = vmax.f32 %v472, 0.0
  %v540 = vmax.f32 %v475, 0.0
  %v541 = vmax.f32 %v478, 0.0
  %v542 = vmax.f32 %v481, 0.0
  %v543 = vmax.f32 %v484, 0.0
  %v544 = vmax.f32 %v487, 0.0
  %v545 = vmax.f32 %v490, 0.0
  %v546 = vmax.f32 %v493, 0.0
  %v547 = vmax.f32 %v496, 0.0
  %v548 = vmax.f32 %v499, 0.0
  %v549 = vmax.f32 %v502, 0.0
  %v550 = vmax.f32 %v505, 0.0
  %v551 = vmax.f32 %v508, 0.0
  %v552 = vmax.f32 %v511, 0.0
  %v553 = vmax.f32 %v514, 0.0
  %v554 = vmax.f32 %v517, 0.0
  %v555 = vmax.f32 %v520, 0.0
  %v556 = vmax.f32 %v523, 0.0
  %v557 = vld [vmem:[%s5] sm:$0xff]
  %v558 = vld [vmem:[%s5 + $0x8] sm:$0xff]
  %v559 = vld [vmem:[%s5 + $0x10] sm:$0xff]
  %v560 = vld [vmem:[%s5 + $0x18] sm:$0xff]
  %v561 = vld [vmem:[%s6] sm:$0x1]
  %v563 = vperm.slane %v561, 0
  %v566 = vsel %vm66, %v525, 0
  %v569 = vsel %vm66, %v526, 0
  %v572 = vsel %vm66, %v527, 0
  %v575 = vsel %vm66, %v528, 0
  %v578 = vsel %vm66, %v529, 0
  %v581 = vsel %vm66, %v530, 0
  %v584 = vsel %vm66, %v531, 0
  %v587 = vsel %vm66, %v532, 0
  %v590 = vsel %vm66, %v533, 0
  %v593 = vsel %vm66, %v534, 0
  %v596 = vsel %vm66, %v535, 0
  %v599 = vsel %vm66, %v536, 0
  %v602 = vsel %vm66, %v537, 0
  %v605 = vsel %vm66, %v538, 0
  %v608 = vsel %vm66, %v539, 0
  %v611 = vsel %vm66, %v540, 0
  %v614 = vsel %vm66, %v541, 0
  %v617 = vsel %vm66, %v542, 0
  %v620 = vsel %vm66, %v543, 0
  %v623 = vsel %vm66, %v544, 0
  %v626 = vsel %vm66, %v545, 0
  %v629 = vsel %vm66, %v546, 0
  %v632 = vsel %vm66, %v547, 0
  %v635 = vsel %vm66, %v548, 0
  %v638 = vsel %vm66, %v549, 0
  %v641 = vsel %vm66, %v550, 0
  %v644 = vsel %vm66, %v551, 0
  %v647 = vsel %vm66, %v552, 0
  %v650 = vsel %vm66, %v553, 0
  %v653 = vsel %vm66, %v554, 0
  %v656 = vsel %vm66, %v555, 0
  %v659 = vsel %vm66, %v556, 0
  %661 = vmatpush.msra.mxu0 0.0
  %662 = vmatpush.msra.mxu0 0.0
  %663 = vmatpush.msra.mxu0 0.0
  %664 = vmatpush.msra.mxu0 0.0
  %665 = vmatpush.msra.mxu0 0.0
  %666 = vmatpush.msra.mxu0 0.0
  %667 = vmatpush.msra.mxu0 0.0
  %668 = vmatpush.msra.mxu0 0.0
  %669 = vmatpush.msra.mxu0 0.0
  %670 = vmatpush.msra.mxu0 0.0
  %671 = vmatpush.msra.mxu0 0.0
  %672 = vmatpush.msra.mxu0 0.0
  %673 = vmatpush.msra.mxu0 %v560
  %674 = vmatpush.msra.mxu0 %v559
  %675 = vmatpush.msra.mxu0 %v558
  %676 = vmatpush.msra.mxu0 %v557
  %677 = vmatmul.f32.gmra.mxu0 %v566
  %v678 = vpop.f32.mrf.mxu0
  %v679 = vadd.f32 %v563, %v678
  %680 = vmatmul.f32.gmra.mxu0 %v569
  %v681 = vpop.f32.mrf.mxu0
  %v682 = vadd.f32 %v563, %v681
  %683 = vmatmul.f32.gmra.mxu0 %v572
  %v684 = vpop.f32.mrf.mxu0
  %v685 = vadd.f32 %v563, %v684
  %686 = vmatmul.f32.gmra.mxu0 %v575
  %v687 = vpop.f32.mrf.mxu0
  %v688 = vadd.f32 %v563, %v687
  %689 = vmatmul.f32.gmra.mxu0 %v578
  %v690 = vpop.f32.mrf.mxu0
  %v691 = vadd.f32 %v563, %v690
  %692 = vmatmul.f32.gmra.mxu0 %v581
  %v693 = vpop.f32.mrf.mxu0
  %v694 = vadd.f32 %v563, %v693
  %695 = vmatmul.f32.gmra.mxu0 %v584
  %v696 = vpop.f32.mrf.mxu0
  %v697 = vadd.f32 %v563, %v696
  %698 = vmatmul.f32.gmra.mxu0 %v587
  %v699 = vpop.f32.mrf.mxu0
  %v700 = vadd.f32 %v563, %v699
  %701 = vmatmul.f32.gmra.mxu0 %v590
  %v702 = vpop.f32.mrf.mxu0
  %v703 = vadd.f32 %v563, %v702
  %704 = vmatmul.f32.gmra.mxu0 %v593
  %v705 = vpop.f32.mrf.mxu0
  %v706 = vadd.f32 %v563, %v705
  %707 = vmatmul.f32.gmra.mxu0 %v596
  %v708 = vpop.f32.mrf.mxu0
  %v709 = vadd.f32 %v563, %v708
  %710 = vmatmul.f32.gmra.mxu0 %v599
  %v711 = vpop.f32.mrf.mxu0
  %v712 = vadd.f32 %v563, %v711
  %713 = vmatmul.f32.gmra.mxu0 %v602
  %v714 = vpop.f32.mrf.mxu0
  %v715 = vadd.f32 %v563, %v714
  %716 = vmatmul.f32.gmra.mxu0 %v605
  %v717 = vpop.f32.mrf.mxu0
  %v718 = vadd.f32 %v563, %v717
  %719 = vmatmul.f32.gmra.mxu0 %v608
  %v720 = vpop.f32.mrf.mxu0
  %v721 = vadd.f32 %v563, %v720
  %722 = vmatmul.f32.gmra.mxu0 %v611
  %v723 = vpop.f32.mrf.mxu0
  %v724 = vadd.f32 %v563, %v723
  %725 = vmatmul.f32.gmra.mxu0 %v614
  %v726 = vpop.f32.mrf.mxu0
  %v727 = vadd.f32 %v563, %v726
  %728 = vmatmul.f32.gmra.mxu0 %v617
  %v729 = vpop.f32.mrf.mxu0
  %v730 = vadd.f32 %v563, %v729
  %731 = vmatmul.f32.gmra.mxu0 %v620
  %v732 = vpop.f32.mrf.mxu0
  %v733 = vadd.f32 %v563, %v732
  %734 = vmatmul.f32.gmra.mxu0 %v623
  %v735 = vpop.f32.mrf.mxu0
  %v736 = vadd.f32 %v563, %v735
  %737 = vmatmul.f32.gmra.mxu0 %v626
  %v738 = vpop.f32.mrf.mxu0
  %v739 = vadd.f32 %v563, %v738
  %740 = vmatmul.f32.gmra.mxu0 %v629
  %v741 = vpop.f32.mrf.mxu0
  %v742 = vadd.f32 %v563, %v741
  %743 = vmatmul.f32.gmra.mxu0 %v632
  %v744 = vpop.f32.mrf.mxu0
  %v745 = vadd.f32 %v563, %v744
  %746 = vmatmul.f32.gmra.mxu0 %v635
  %v747 = vpop.f32.mrf.mxu0
  %v748 = vadd.f32 %v563, %v747
  %749 = vmatmul.f32.gmra.mxu0 %v638
  %v750 = vpop.f32.mrf.mxu0
  %v751 = vadd.f32 %v563, %v750
  %752 = vmatmul.f32.gmra.mxu0 %v641
  %v753 = vpop.f32.mrf.mxu0
  %v754 = vadd.f32 %v563, %v753
  %755 = vmatmul.f32.gmra.mxu0 %v644
  %v756 = vpop.f32.mrf.mxu0
  %v757 = vadd.f32 %v563, %v756
  %758 = vmatmul.f32.gmra.mxu0 %v647
  %v759 = vpop.f32.mrf.mxu0
  %v760 = vadd.f32 %v563, %v759
  %761 = vmatmul.f32.gmra.mxu0 %v650
  %v762 = vpop.f32.mrf.mxu0
  %v763 = vadd.f32 %v563, %v762
  %764 = vmatmul.f32.gmra.mxu0 %v653
  %v765 = vpop.f32.mrf.mxu0
  %v766 = vadd.f32 %v563, %v765
  %767 = vmatmul.f32.gmra.mxu0 %v656
  %v768 = vpop.f32.mrf.mxu0
  %v769 = vadd.f32 %v563, %v768
  %770 = vmatmul.f32.gmra.mxu0 %v659
  %v771 = vpop.f32.mrf.mxu0
  %v772 = vadd.f32 %v563, %v771
  %773 = vdwg.mxu0
  %v774 = vlaneseq
  %v775 = vand.u32 %v774, 127
  %vm776 = vcmp.eq.s32.totalorder %v775, 0
  %v777 = vxor.u32 %v679, 2147483648
  %v778 = vxor.u32 %v682, 2147483648
  %v779 = vxor.u32 %v685, 2147483648
  %v780 = vxor.u32 %v688, 2147483648
  %v781 = vxor.u32 %v691, 2147483648
  %v782 = vxor.u32 %v694, 2147483648
  %v783 = vxor.u32 %v697, 2147483648
  %v784 = vxor.u32 %v700, 2147483648
  %v785 = vxor.u32 %v703, 2147483648
  %v786 = vxor.u32 %v706, 2147483648
  %v787 = vxor.u32 %v709, 2147483648
  %v788 = vxor.u32 %v712, 2147483648
  %v789 = vxor.u32 %v715, 2147483648
  %v790 = vxor.u32 %v718, 2147483648
  %v791 = vxor.u32 %v721, 2147483648
  %v792 = vxor.u32 %v724, 2147483648
  %v793 = vxor.u32 %v727, 2147483648
  %v794 = vxor.u32 %v730, 2147483648
  %v795 = vxor.u32 %v733, 2147483648
  %v796 = vxor.u32 %v736, 2147483648
  %v797 = vxor.u32 %v739, 2147483648
  %v798 = vxor.u32 %v742, 2147483648
  %v799 = vxor.u32 %v745, 2147483648
  %v800 = vxor.u32 %v748, 2147483648
  %v801 = vxor.u32 %v751, 2147483648
  %v802 = vxor.u32 %v754, 2147483648
  %v803 = vxor.u32 %v757, 2147483648
  %v804 = vxor.u32 %v760, 2147483648
  %v805 = vxor.u32 %v763, 2147483648
  %v806 = vxor.u32 %v766, 2147483648
  %v807 = vxor.u32 %v769, 2147483648
  %v808 = vxor.u32 %v772, 2147483648
  %v809 = vmul.f32 %v777, 1.442695
  %v810 = vpow.pop %v809
  %v811 = vmul.f32 %v778, 1.442695
  %v812 = vpow.pop %v811
  %v813 = vmul.f32 %v779, 1.442695
  %v814 = vpow.pop %v813
  %v815 = vmul.f32 %v780, 1.442695
  %v816 = vpow.pop %v815
  %v817 = vmul.f32 %v781, 1.442695
  %v818 = vpow.pop %v817
  %v819 = vmul.f32 %v782, 1.442695
  %v820 = vpow.pop %v819
  %v821 = vmul.f32 %v783, 1.442695
  %v822 = vpow.pop %v821
  %v823 = vmul.f32 %v784, 1.442695
  %v824 = vpow.pop %v823
  %v825 = vmul.f32 %v785, 1.442695
  %v826 = vpow.pop %v825
  %v827 = vmul.f32 %v786, 1.442695
  %v828 = vpow.pop %v827
  %v829 = vmul.f32 %v787, 1.442695
  %v830 = vpow.pop %v829
  %v831 = vmul.f32 %v788, 1.442695
  %v832 = vpow.pop %v831
  %v833 = vmul.f32 %v789, 1.442695
  %v834 = vpow.pop %v833
  %v835 = vmul.f32 %v790, 1.442695
  %v836 = vpow.pop %v835
  %v837 = vmul.f32 %v791, 1.442695
  %v838 = vpow.pop %v837
  %v839 = vmul.f32 %v792, 1.442695
  %v840 = vpow.pop %v839
  %v841 = vmul.f32 %v793, 1.442695
  %v842 = vpow.pop %v841
  %v843 = vmul.f32 %v794, 1.442695
  %v844 = vpow.pop %v843
  %v845 = vmul.f32 %v795, 1.442695
  %v846 = vpow.pop %v845
  %v847 = vmul.f32 %v796, 1.442695
  %v848 = vpow.pop %v847
  %v849 = vmul.f32 %v797, 1.442695
  %v850 = vpow.pop %v849
  %v851 = vmul.f32 %v798, 1.442695
  %v852 = vpow.pop %v851
  %v853 = vmul.f32 %v799, 1.442695
  %v854 = vpow.pop %v853
  %v855 = vmul.f32 %v800, 1.442695
  %v856 = vpow.pop %v855
  %v857 = vmul.f32 %v801, 1.442695
  %v858 = vpow.pop %v857
  %v859 = vmul.f32 %v802, 1.442695
  %v860 = vpow.pop %v859
  %v861 = vmul.f32 %v803, 1.442695
  %v862 = vpow.pop %v861
  %v863 = vmul.f32 %v804, 1.442695
  %v864 = vpow.pop %v863
  %v865 = vmul.f32 %v805, 1.442695
  %v866 = vpow.pop %v865
  %v867 = vmul.f32 %v806, 1.442695
  %v868 = vpow.pop %v867
  %v869 = vmul.f32 %v807, 1.442695
  %v870 = vpow.pop %v869
  %v871 = vmul.f32 %v808, 1.442695
  %v872 = vpow.pop %v871
  %v873 = vadd.f32 %v810, 1.0
  %v874 = vadd.f32 %v812, 1.0
  %v875 = vadd.f32 %v814, 1.0
  %v876 = vadd.f32 %v816, 1.0
  %v877 = vadd.f32 %v818, 1.0
  %v878 = vadd.f32 %v820, 1.0
  %v879 = vadd.f32 %v822, 1.0
  %v880 = vadd.f32 %v824, 1.0
  %v881 = vadd.f32 %v826, 1.0
  %v882 = vadd.f32 %v828, 1.0
  %v883 = vadd.f32 %v830, 1.0
  %v884 = vadd.f32 %v832, 1.0
  %v885 = vadd.f32 %v834, 1.0
  %v886 = vadd.f32 %v836, 1.0
  %v887 = vadd.f32 %v838, 1.0
  %v888 = vadd.f32 %v840, 1.0
  %v889 = vadd.f32 %v842, 1.0
  %v890 = vadd.f32 %v844, 1.0
  %v891 = vadd.f32 %v846, 1.0
  %v892 = vadd.f32 %v848, 1.0
  %v893 = vadd.f32 %v850, 1.0
  %v894 = vadd.f32 %v852, 1.0
  %v895 = vadd.f32 %v854, 1.0
  %v896 = vadd.f32 %v856, 1.0
  %v897 = vadd.f32 %v858, 1.0
  %v898 = vadd.f32 %v860, 1.0
  %v899 = vadd.f32 %v862, 1.0
  %v900 = vadd.f32 %v864, 1.0
  %v901 = vadd.f32 %v866, 1.0
  %v902 = vadd.f32 %v868, 1.0
  %v903 = vadd.f32 %v870, 1.0
  %v904 = vadd.f32 %v872, 1.0
  %v905 = vrcp.pop %v873
  %v906 = vmul.f32 %v873, %v905
  %v907 = vsub.f32 1.0, %v906
  %v908 = vmul.f32 %v905, %v907
  %v909 = vadd.f32 %v905, %v908
  %vm910 = vweird.f32 %v873
  %vm911 = vweird.f32 %v905
  %vm912 = vmor %vm910, %vm911
  %v913 = vsel %vm912, %v905, %v909
  %v914 = vand.u32 2147483647, %v873
  %vm915 = vcmp.eq.f32.partialorder %v914, 8.507059e+37
  %v916 = vand.u32 %v873, 2147483648
  %v917 = vor.u32 1.1754944e-38, %v916
  %v918 = vsel %vm915, %v917, %v913
  %v919 = vmul.f32 1.0, %v918
  %v920 = vrcp.pop %v874
  %v921 = vmul.f32 %v874, %v920
  %v922 = vsub.f32 1.0, %v921
  %v923 = vmul.f32 %v920, %v922
  %v924 = vadd.f32 %v920, %v923
  %vm925 = vweird.f32 %v874
  %vm926 = vweird.f32 %v920
  %vm927 = vmor %vm925, %vm926
  %v928 = vsel %vm927, %v920, %v924
  %v929 = vand.u32 2147483647, %v874
  %vm930 = vcmp.eq.f32.partialorder %v929, 8.507059e+37
  %v931 = vand.u32 %v874, 2147483648
  %v932 = vor.u32 1.1754944e-38, %v931
  %v933 = vsel %vm930, %v932, %v928
  %v934 = vmul.f32 1.0, %v933
  %v935 = vrcp.pop %v875
  %v936 = vmul.f32 %v875, %v935
  %v937 = vsub.f32 1.0, %v936
  %v938 = vmul.f32 %v935, %v937
  %v939 = vadd.f32 %v935, %v938
  %vm940 = vweird.f32 %v875
  %vm941 = vweird.f32 %v935
  %vm942 = vmor %vm940, %vm941
  %v943 = vsel %vm942, %v935, %v939
  %v944 = vand.u32 2147483647, %v875
  %vm945 = vcmp.eq.f32.partialorder %v944, 8.507059e+37
  %v946 = vand.u32 %v875, 2147483648
  %v947 = vor.u32 1.1754944e-38, %v946
  %v948 = vsel %vm945, %v947, %v943
  %v949 = vmul.f32 1.0, %v948
  %v950 = vrcp.pop %v876
  %v951 = vmul.f32 %v876, %v950
  %v952 = vsub.f32 1.0, %v951
  %v953 = vmul.f32 %v950, %v952
  %v954 = vadd.f32 %v950, %v953
  %vm955 = vweird.f32 %v876
  %vm956 = vweird.f32 %v950
  %vm957 = vmor %vm955, %vm956
  %v958 = vsel %vm957, %v950, %v954
  %v959 = vand.u32 2147483647, %v876
  %vm960 = vcmp.eq.f32.partialorder %v959, 8.507059e+37
  %v961 = vand.u32 %v876, 2147483648
  %v962 = vor.u32 1.1754944e-38, %v961
  %v963 = vsel %vm960, %v962, %v958
  %v964 = vmul.f32 1.0, %v963
  %v965 = vrcp.pop %v877
  %v966 = vmul.f32 %v877, %v965
  %v967 = vsub.f32 1.0, %v966
  %v968 = vmul.f32 %v965, %v967
  %v969 = vadd.f32 %v965, %v968
  %vm970 = vweird.f32 %v877
  %vm971 = vweird.f32 %v965
  %vm972 = vmor %vm970, %vm971
  %v973 = vsel %vm972, %v965, %v969
  %v974 = vand.u32 2147483647, %v877
  %vm975 = vcmp.eq.f32.partialorder %v974, 8.507059e+37
  %v976 = vand.u32 %v877, 2147483648
  %v977 = vor.u32 1.1754944e-38, %v976
  %v978 = vsel %vm975, %v977, %v973
  %v979 = vmul.f32 1.0, %v978
  %v980 = vrcp.pop %v878
  %v981 = vmul.f32 %v878, %v980
  %v982 = vsub.f32 1.0, %v981
  %v983 = vmul.f32 %v980, %v982
  %v984 = vadd.f32 %v980, %v983
  %vm985 = vweird.f32 %v878
  %vm986 = vweird.f32 %v980
  %vm987 = vmor %vm985, %vm986
  %v988 = vsel %vm987, %v980, %v984
  %v989 = vand.u32 2147483647, %v878
  %vm990 = vcmp.eq.f32.partialorder %v989, 8.507059e+37
  %v991 = vand.u32 %v878, 2147483648
  %v992 = vor.u32 1.1754944e-38, %v991
  %v993 = vsel %vm990, %v992, %v988
  %v994 = vmul.f32 1.0, %v993
  %v995 = vrcp.pop %v879
  %v996 = vmul.f32 %v879, %v995
  %v997 = vsub.f32 1.0, %v996
  %v998 = vmul.f32 %v995, %v997
  %v999 = vadd.f32 %v995, %v998
  %vm1000 = vweird.f32 %v879
  %vm1001 = vweird.f32 %v995
  %vm1002 = vmor %vm1000, %vm1001
  %v1003 = vsel %vm1002, %v995, %v999
  %v1004 = vand.u32 2147483647, %v879
  %vm1005 = vcmp.eq.f32.partialorder %v1004, 8.507059e+37
  %v1006 = vand.u32 %v879, 2147483648
  %v1007 = vor.u32 1.1754944e-38, %v1006
  %v1008 = vsel %vm1005, %v1007, %v1003
  %v1009 = vmul.f32 1.0, %v1008
  %v1010 = vrcp.pop %v880
  %v1011 = vmul.f32 %v880, %v1010
  %v1012 = vsub.f32 1.0, %v1011
  %v1013 = vmul.f32 %v1010, %v1012
  %v1014 = vadd.f32 %v1010, %v1013
  %vm1015 = vweird.f32 %v880
  %vm1016 = vweird.f32 %v1010
  %vm1017 = vmor %vm1015, %vm1016
  %v1018 = vsel %vm1017, %v1010, %v1014
  %v1019 = vand.u32 2147483647, %v880
  %vm1020 = vcmp.eq.f32.partialorder %v1019, 8.507059e+37
  %v1021 = vand.u32 %v880, 2147483648
  %v1022 = vor.u32 1.1754944e-38, %v1021
  %v1023 = vsel %vm1020, %v1022, %v1018
  %v1024 = vmul.f32 1.0, %v1023
  %v1025 = vrcp.pop %v881
  %v1026 = vmul.f32 %v881, %v1025
  %v1027 = vsub.f32 1.0, %v1026
  %v1028 = vmul.f32 %v1025, %v1027
  %v1029 = vadd.f32 %v1025, %v1028
  %vm1030 = vweird.f32 %v881
  %vm1031 = vweird.f32 %v1025
  %vm1032 = vmor %vm1030, %vm1031
  %v1033 = vsel %vm1032, %v1025, %v1029
  %v1034 = vand.u32 2147483647, %v881
  %vm1035 = vcmp.eq.f32.partialorder %v1034, 8.507059e+37
  %v1036 = vand.u32 %v881, 2147483648
  %v1037 = vor.u32 1.1754944e-38, %v1036
  %v1038 = vsel %vm1035, %v1037, %v1033
  %v1039 = vmul.f32 1.0, %v1038
  %v1040 = vrcp.pop %v882
  %v1041 = vmul.f32 %v882, %v1040
  %v1042 = vsub.f32 1.0, %v1041
  %v1043 = vmul.f32 %v1040, %v1042
  %v1044 = vadd.f32 %v1040, %v1043
  %vm1045 = vweird.f32 %v882
  %vm1046 = vweird.f32 %v1040
  %vm1047 = vmor %vm1045, %vm1046
  %v1048 = vsel %vm1047, %v1040, %v1044
  %v1049 = vand.u32 2147483647, %v882
  %vm1050 = vcmp.eq.f32.partialorder %v1049, 8.507059e+37
  %v1051 = vand.u32 %v882, 2147483648
  %v1052 = vor.u32 1.1754944e-38, %v1051
  %v1053 = vsel %vm1050, %v1052, %v1048
  %v1054 = vmul.f32 1.0, %v1053
  %v1055 = vrcp.pop %v883
  %v1056 = vmul.f32 %v883, %v1055
  %v1057 = vsub.f32 1.0, %v1056
  %v1058 = vmul.f32 %v1055, %v1057
  %v1059 = vadd.f32 %v1055, %v1058
  %vm1060 = vweird.f32 %v883
  %vm1061 = vweird.f32 %v1055
  %vm1062 = vmor %vm1060, %vm1061
  %v1063 = vsel %vm1062, %v1055, %v1059
  %v1064 = vand.u32 2147483647, %v883
  %vm1065 = vcmp.eq.f32.partialorder %v1064, 8.507059e+37
  %v1066 = vand.u32 %v883, 2147483648
  %v1067 = vor.u32 1.1754944e-38, %v1066
  %v1068 = vsel %vm1065, %v1067, %v1063
  %v1069 = vmul.f32 1.0, %v1068
  %v1070 = vrcp.pop %v884
  %v1071 = vmul.f32 %v884, %v1070
  %v1072 = vsub.f32 1.0, %v1071
  %v1073 = vmul.f32 %v1070, %v1072
  %v1074 = vadd.f32 %v1070, %v1073
  %vm1075 = vweird.f32 %v884
  %vm1076 = vweird.f32 %v1070
  %vm1077 = vmor %vm1075, %vm1076
  %v1078 = vsel %vm1077, %v1070, %v1074
  %v1079 = vand.u32 2147483647, %v884
  %vm1080 = vcmp.eq.f32.partialorder %v1079, 8.507059e+37
  %v1081 = vand.u32 %v884, 2147483648
  %v1082 = vor.u32 1.1754944e-38, %v1081
  %v1083 = vsel %vm1080, %v1082, %v1078
  %v1084 = vmul.f32 1.0, %v1083
  %v1085 = vrcp.pop %v885
  %v1086 = vmul.f32 %v885, %v1085
  %v1087 = vsub.f32 1.0, %v1086
  %v1088 = vmul.f32 %v1085, %v1087
  %v1089 = vadd.f32 %v1085, %v1088
  %vm1090 = vweird.f32 %v885
  %vm1091 = vweird.f32 %v1085
  %vm1092 = vmor %vm1090, %vm1091
  %v1093 = vsel %vm1092, %v1085, %v1089
  %v1094 = vand.u32 2147483647, %v885
  %vm1095 = vcmp.eq.f32.partialorder %v1094, 8.507059e+37
  %v1096 = vand.u32 %v885, 2147483648
  %v1097 = vor.u32 1.1754944e-38, %v1096
  %v1098 = vsel %vm1095, %v1097, %v1093
  %v1099 = vmul.f32 1.0, %v1098
  %v1100 = vrcp.pop %v886
  %v1101 = vmul.f32 %v886, %v1100
  %v1102 = vsub.f32 1.0, %v1101
  %v1103 = vmul.f32 %v1100, %v1102
  %v1104 = vadd.f32 %v1100, %v1103
  %vm1105 = vweird.f32 %v886
  %vm1106 = vweird.f32 %v1100
  %vm1107 = vmor %vm1105, %vm1106
  %v1108 = vsel %vm1107, %v1100, %v1104
  %v1109 = vand.u32 2147483647, %v886
  %vm1110 = vcmp.eq.f32.partialorder %v1109, 8.507059e+37
  %v1111 = vand.u32 %v886, 2147483648
  %v1112 = vor.u32 1.1754944e-38, %v1111
  %v1113 = vsel %vm1110, %v1112, %v1108
  %v1114 = vmul.f32 1.0, %v1113
  %v1115 = vrcp.pop %v887
  %v1116 = vmul.f32 %v887, %v1115
  %v1117 = vsub.f32 1.0, %v1116
  %v1118 = vmul.f32 %v1115, %v1117
  %v1119 = vadd.f32 %v1115, %v1118
  %vm1120 = vweird.f32 %v887
  %vm1121 = vweird.f32 %v1115
  %vm1122 = vmor %vm1120, %vm1121
  %v1123 = vsel %vm1122, %v1115, %v1119
  %v1124 = vand.u32 2147483647, %v887
  %vm1125 = vcmp.eq.f32.partialorder %v1124, 8.507059e+37
  %v1126 = vand.u32 %v887, 2147483648
  %v1127 = vor.u32 1.1754944e-38, %v1126
  %v1128 = vsel %vm1125, %v1127, %v1123
  %v1129 = vmul.f32 1.0, %v1128
  %v1130 = vrcp.pop %v888
  %v1131 = vmul.f32 %v888, %v1130
  %v1132 = vsub.f32 1.0, %v1131
  %v1133 = vmul.f32 %v1130, %v1132
  %v1134 = vadd.f32 %v1130, %v1133
  %vm1135 = vweird.f32 %v888
  %vm1136 = vweird.f32 %v1130
  %vm1137 = vmor %vm1135, %vm1136
  %v1138 = vsel %vm1137, %v1130, %v1134
  %v1139 = vand.u32 2147483647, %v888
  %vm1140 = vcmp.eq.f32.partialorder %v1139, 8.507059e+37
  %v1141 = vand.u32 %v888, 2147483648
  %v1142 = vor.u32 1.1754944e-38, %v1141
  %v1143 = vsel %vm1140, %v1142, %v1138
  %v1144 = vmul.f32 1.0, %v1143
  %v1145 = vrcp.pop %v889
  %v1146 = vmul.f32 %v889, %v1145
  %v1147 = vsub.f32 1.0, %v1146
  %v1148 = vmul.f32 %v1145, %v1147
  %v1149 = vadd.f32 %v1145, %v1148
  %vm1150 = vweird.f32 %v889
  %vm1151 = vweird.f32 %v1145
  %vm1152 = vmor %vm1150, %vm1151
  %v1153 = vsel %vm1152, %v1145, %v1149
  %v1154 = vand.u32 2147483647, %v889
  %vm1155 = vcmp.eq.f32.partialorder %v1154, 8.507059e+37
  %v1156 = vand.u32 %v889, 2147483648
  %v1157 = vor.u32 1.1754944e-38, %v1156
  %v1158 = vsel %vm1155, %v1157, %v1153
  %v1159 = vmul.f32 1.0, %v1158
  %v1160 = vrcp.pop %v890
  %v1161 = vmul.f32 %v890, %v1160
  %v1162 = vsub.f32 1.0, %v1161
  %v1163 = vmul.f32 %v1160, %v1162
  %v1164 = vadd.f32 %v1160, %v1163
  %vm1165 = vweird.f32 %v890
  %vm1166 = vweird.f32 %v1160
  %vm1167 = vmor %vm1165, %vm1166
  %v1168 = vsel %vm1167, %v1160, %v1164
  %v1169 = vand.u32 2147483647, %v890
  %vm1170 = vcmp.eq.f32.partialorder %v1169, 8.507059e+37
  %v1171 = vand.u32 %v890, 2147483648
  %v1172 = vor.u32 1.1754944e-38, %v1171
  %v1173 = vsel %vm1170, %v1172, %v1168
  %v1174 = vmul.f32 1.0, %v1173
  %v1175 = vrcp.pop %v891
  %v1176 = vmul.f32 %v891, %v1175
  %v1177 = vsub.f32 1.0, %v1176
  %v1178 = vmul.f32 %v1175, %v1177
  %v1179 = vadd.f32 %v1175, %v1178
  %vm1180 = vweird.f32 %v891
  %vm1181 = vweird.f32 %v1175
  %vm1182 = vmor %vm1180, %vm1181
  %v1183 = vsel %vm1182, %v1175, %v1179
  %v1184 = vand.u32 2147483647, %v891
  %vm1185 = vcmp.eq.f32.partialorder %v1184, 8.507059e+37
  %v1186 = vand.u32 %v891, 2147483648
  %v1187 = vor.u32 1.1754944e-38, %v1186
  %v1188 = vsel %vm1185, %v1187, %v1183
  %v1189 = vmul.f32 1.0, %v1188
  %v1190 = vrcp.pop %v892
  %v1191 = vmul.f32 %v892, %v1190
  %v1192 = vsub.f32 1.0, %v1191
  %v1193 = vmul.f32 %v1190, %v1192
  %v1194 = vadd.f32 %v1190, %v1193
  %vm1195 = vweird.f32 %v892
  %vm1196 = vweird.f32 %v1190
  %vm1197 = vmor %vm1195, %vm1196
  %v1198 = vsel %vm1197, %v1190, %v1194
  %v1199 = vand.u32 2147483647, %v892
  %vm1200 = vcmp.eq.f32.partialorder %v1199, 8.507059e+37
  %v1201 = vand.u32 %v892, 2147483648
  %v1202 = vor.u32 1.1754944e-38, %v1201
  %v1203 = vsel %vm1200, %v1202, %v1198
  %v1204 = vmul.f32 1.0, %v1203
  %v1205 = vrcp.pop %v893
  %v1206 = vmul.f32 %v893, %v1205
  %v1207 = vsub.f32 1.0, %v1206
  %v1208 = vmul.f32 %v1205, %v1207
  %v1209 = vadd.f32 %v1205, %v1208
  %vm1210 = vweird.f32 %v893
  %vm1211 = vweird.f32 %v1205
  %vm1212 = vmor %vm1210, %vm1211
  %v1213 = vsel %vm1212, %v1205, %v1209
  %v1214 = vand.u32 2147483647, %v893
  %vm1215 = vcmp.eq.f32.partialorder %v1214, 8.507059e+37
  %v1216 = vand.u32 %v893, 2147483648
  %v1217 = vor.u32 1.1754944e-38, %v1216
  %v1218 = vsel %vm1215, %v1217, %v1213
  %v1219 = vmul.f32 1.0, %v1218
  %v1220 = vrcp.pop %v894
  %v1221 = vmul.f32 %v894, %v1220
  %v1222 = vsub.f32 1.0, %v1221
  %v1223 = vmul.f32 %v1220, %v1222
  %v1224 = vadd.f32 %v1220, %v1223
  %vm1225 = vweird.f32 %v894
  %vm1226 = vweird.f32 %v1220
  %vm1227 = vmor %vm1225, %vm1226
  %v1228 = vsel %vm1227, %v1220, %v1224
  %v1229 = vand.u32 2147483647, %v894
  %vm1230 = vcmp.eq.f32.partialorder %v1229, 8.507059e+37
  %v1231 = vand.u32 %v894, 2147483648
  %v1232 = vor.u32 1.1754944e-38, %v1231
  %v1233 = vsel %vm1230, %v1232, %v1228
  %v1234 = vmul.f32 1.0, %v1233
  %v1235 = vrcp.pop %v895
  %v1236 = vmul.f32 %v895, %v1235
  %v1237 = vsub.f32 1.0, %v1236
  %v1238 = vmul.f32 %v1235, %v1237
  %v1239 = vadd.f32 %v1235, %v1238
  %vm1240 = vweird.f32 %v895
  %vm1241 = vweird.f32 %v1235
  %vm1242 = vmor %vm1240, %vm1241
  %v1243 = vsel %vm1242, %v1235, %v1239
  %v1244 = vand.u32 2147483647, %v895
  %vm1245 = vcmp.eq.f32.partialorder %v1244, 8.507059e+37
  %v1246 = vand.u32 %v895, 2147483648
  %v1247 = vor.u32 1.1754944e-38, %v1246
  %v1248 = vsel %vm1245, %v1247, %v1243
  %v1249 = vmul.f32 1.0, %v1248
  %v1250 = vrcp.pop %v896
  %v1251 = vmul.f32 %v896, %v1250
  %v1252 = vsub.f32 1.0, %v1251
  %v1253 = vmul.f32 %v1250, %v1252
  %v1254 = vadd.f32 %v1250, %v1253
  %vm1255 = vweird.f32 %v896
  %vm1256 = vweird.f32 %v1250
  %vm1257 = vmor %vm1255, %vm1256
  %v1258 = vsel %vm1257, %v1250, %v1254
  %v1259 = vand.u32 2147483647, %v896
  %vm1260 = vcmp.eq.f32.partialorder %v1259, 8.507059e+37
  %v1261 = vand.u32 %v896, 2147483648
  %v1262 = vor.u32 1.1754944e-38, %v1261
  %v1263 = vsel %vm1260, %v1262, %v1258
  %v1264 = vmul.f32 1.0, %v1263
  %v1265 = vrcp.pop %v897
  %v1266 = vmul.f32 %v897, %v1265
  %v1267 = vsub.f32 1.0, %v1266
  %v1268 = vmul.f32 %v1265, %v1267
  %v1269 = vadd.f32 %v1265, %v1268
  %vm1270 = vweird.f32 %v897
  %vm1271 = vweird.f32 %v1265
  %vm1272 = vmor %vm1270, %vm1271
  %v1273 = vsel %vm1272, %v1265, %v1269
  %v1274 = vand.u32 2147483647, %v897
  %vm1275 = vcmp.eq.f32.partialorder %v1274, 8.507059e+37
  %v1276 = vand.u32 %v897, 2147483648
  %v1277 = vor.u32 1.1754944e-38, %v1276
  %v1278 = vsel %vm1275, %v1277, %v1273
  %v1279 = vmul.f32 1.0, %v1278
  %v1280 = vrcp.pop %v898
  %v1281 = vmul.f32 %v898, %v1280
  %v1282 = vsub.f32 1.0, %v1281
  %v1283 = vmul.f32 %v1280, %v1282
  %v1284 = vadd.f32 %v1280, %v1283
  %vm1285 = vweird.f32 %v898
  %vm1286 = vweird.f32 %v1280
  %vm1287 = vmor %vm1285, %vm1286
  %v1288 = vsel %vm1287, %v1280, %v1284
  %v1289 = vand.u32 2147483647, %v898
  %vm1290 = vcmp.eq.f32.partialorder %v1289, 8.507059e+37
  %v1291 = vand.u32 %v898, 2147483648
  %v1292 = vor.u32 1.1754944e-38, %v1291
  %v1293 = vsel %vm1290, %v1292, %v1288
  %v1294 = vmul.f32 1.0, %v1293
  %v1295 = vrcp.pop %v899
  %v1296 = vmul.f32 %v899, %v1295
  %v1297 = vsub.f32 1.0, %v1296
  %v1298 = vmul.f32 %v1295, %v1297
  %v1299 = vadd.f32 %v1295, %v1298
  %vm1300 = vweird.f32 %v899
  %vm1301 = vweird.f32 %v1295
  %vm1302 = vmor %vm1300, %vm1301
  %v1303 = vsel %vm1302, %v1295, %v1299
  %v1304 = vand.u32 2147483647, %v899
  %vm1305 = vcmp.eq.f32.partialorder %v1304, 8.507059e+37
  %v1306 = vand.u32 %v899, 2147483648
  %v1307 = vor.u32 1.1754944e-38, %v1306
  %v1308 = vsel %vm1305, %v1307, %v1303
  %v1309 = vmul.f32 1.0, %v1308
  %v1310 = vrcp.pop %v900
  %v1311 = vmul.f32 %v900, %v1310
  %v1312 = vsub.f32 1.0, %v1311
  %v1313 = vmul.f32 %v1310, %v1312
  %v1314 = vadd.f32 %v1310, %v1313
  %vm1315 = vweird.f32 %v900
  %vm1316 = vweird.f32 %v1310
  %vm1317 = vmor %vm1315, %vm1316
  %v1318 = vsel %vm1317, %v1310, %v1314
  %v1319 = vand.u32 2147483647, %v900
  %vm1320 = vcmp.eq.f32.partialorder %v1319, 8.507059e+37
  %v1321 = vand.u32 %v900, 2147483648
  %v1322 = vor.u32 1.1754944e-38, %v1321
  %v1323 = vsel %vm1320, %v1322, %v1318
  %v1324 = vmul.f32 1.0, %v1323
  %v1325 = vrcp.pop %v901
  %v1326 = vmul.f32 %v901, %v1325
  %v1327 = vsub.f32 1.0, %v1326
  %v1328 = vmul.f32 %v1325, %v1327
  %v1329 = vadd.f32 %v1325, %v1328
  %vm1330 = vweird.f32 %v901
  %vm1331 = vweird.f32 %v1325
  %vm1332 = vmor %vm1330, %vm1331
  %v1333 = vsel %vm1332, %v1325, %v1329
  %v1334 = vand.u32 2147483647, %v901
  %vm1335 = vcmp.eq.f32.partialorder %v1334, 8.507059e+37
  %v1336 = vand.u32 %v901, 2147483648
  %v1337 = vor.u32 1.1754944e-38, %v1336
  %v1338 = vsel %vm1335, %v1337, %v1333
  %v1339 = vmul.f32 1.0, %v1338
  %v1340 = vrcp.pop %v902
  %v1341 = vmul.f32 %v902, %v1340
  %v1342 = vsub.f32 1.0, %v1341
  %v1343 = vmul.f32 %v1340, %v1342
  %v1344 = vadd.f32 %v1340, %v1343
  %vm1345 = vweird.f32 %v902
  %vm1346 = vweird.f32 %v1340
  %vm1347 = vmor %vm1345, %vm1346
  %v1348 = vsel %vm1347, %v1340, %v1344
  %v1349 = vand.u32 2147483647, %v902
  %vm1350 = vcmp.eq.f32.partialorder %v1349, 8.507059e+37
  %v1351 = vand.u32 %v902, 2147483648
  %v1352 = vor.u32 1.1754944e-38, %v1351
  %v1353 = vsel %vm1350, %v1352, %v1348
  %v1354 = vmul.f32 1.0, %v1353
  %v1355 = vrcp.pop %v903
  %v1356 = vmul.f32 %v903, %v1355
  %v1357 = vsub.f32 1.0, %v1356
  %v1358 = vmul.f32 %v1355, %v1357
  %v1359 = vadd.f32 %v1355, %v1358
  %vm1360 = vweird.f32 %v903
  %vm1361 = vweird.f32 %v1355
  %vm1362 = vmor %vm1360, %vm1361
  %v1363 = vsel %vm1362, %v1355, %v1359
  %v1364 = vand.u32 2147483647, %v903
  %vm1365 = vcmp.eq.f32.partialorder %v1364, 8.507059e+37
  %v1366 = vand.u32 %v903, 2147483648
  %v1367 = vor.u32 1.1754944e-38, %v1366
  %v1368 = vsel %vm1365, %v1367, %v1363
  %v1369 = vmul.f32 1.0, %v1368
  %v1370 = vrcp.pop %v904
  %v1371 = vmul.f32 %v904, %v1370
  %v1372 = vsub.f32 1.0, %v1371
  %v1373 = vmul.f32 %v1370, %v1372
  %v1374 = vadd.f32 %v1370, %v1373
  %vm1375 = vweird.f32 %v904
  %vm1376 = vweird.f32 %v1370
  %vm1377 = vmor %vm1375, %vm1376
  %v1378 = vsel %vm1377, %v1370, %v1374
  %v1379 = vand.u32 2147483647, %v904
  %vm1380 = vcmp.eq.f32.partialorder %v1379, 8.507059e+37
  %v1381 = vand.u32 %v904, 2147483648
  %v1382 = vor.u32 1.1754944e-38, %v1381
  %v1383 = vsel %vm1380, %v1382, %v1378
  %v1384 = vmul.f32 1.0, %v1383
  %v1385 = vsel %vm776, %v919, %v679
  %v1386 = vsel %vm776, %v934, %v682
  %v1387 = vsel %vm776, %v949, %v685
  %v1388 = vsel %vm776, %v964, %v688
  %v1389 = vsel %vm776, %v979, %v691
  %v1390 = vsel %vm776, %v994, %v694
  %v1391 = vsel %vm776, %v1009, %v697
  %v1392 = vsel %vm776, %v1024, %v700
  %v1393 = vsel %vm776, %v1039, %v703
  %v1394 = vsel %vm776, %v1054, %v706
  %v1395 = vsel %vm776, %v1069, %v709
  %v1396 = vsel %vm776, %v1084, %v712
  %v1397 = vsel %vm776, %v1099, %v715
  %v1398 = vsel %vm776, %v1114, %v718
  %v1399 = vsel %vm776, %v1129, %v721
  %v1400 = vsel %vm776, %v1144, %v724
  %v1401 = vsel %vm776, %v1159, %v727
  %v1402 = vsel %vm776, %v1174, %v730
  %v1403 = vsel %vm776, %v1189, %v733
  %v1404 = vsel %vm776, %v1204, %v736
  %v1405 = vsel %vm776, %v1219, %v739
  %v1406 = vsel %vm776, %v1234, %v742
  %v1407 = vsel %vm776, %v1249, %v745
  %v1408 = vsel %vm776, %v1264, %v748
  %v1409 = vsel %vm776, %v1279, %v751
  %v1410 = vsel %vm776, %v1294, %v754
  %v1411 = vsel %vm776, %v1309, %v757
  %v1412 = vsel %vm776, %v1324, %v760
  %v1413 = vsel %vm776, %v1339, %v763
  %v1414 = vsel %vm776, %v1354, %v766
  %v1415 = vsel %vm776, %v1369, %v769
  %v1416 = vsel %vm776, %v1384, %v772
  %1417 = vst [vmem:[%s7] sm:$0xff] %v1385
  %1418 = vst [vmem:[%s7 + $0x8] sm:$0xff] %v1386
  %1419 = vst [vmem:[%s7 + $0x10] sm:$0xff] %v1387
  %1420 = vst [vmem:[%s7 + $0x18] sm:$0xff] %v1388
  %1421 = vst [vmem:[%s7 + $0x20] sm:$0xff] %v1389
  %1422 = vst [vmem:[%s7 + $0x28] sm:$0xff] %v1390
  %1423 = vst [vmem:[%s7 + $0x30] sm:$0xff] %v1391
  %1424 = vst [vmem:[%s7 + $0x38] sm:$0xff] %v1392
  %1425 = vst [vmem:[%s7 + $0x40] sm:$0xff] %v1393
  %1426 = vst [vmem:[%s7 + $0x48] sm:$0xff] %v1394
  %1427 = vst [vmem:[%s7 + $0x50] sm:$0xff] %v1395
  %1428 = vst [vmem:[%s7 + $0x58] sm:$0xff] %v1396
  %1429 = vst [vmem:[%s7 + $0x60] sm:$0xff] %v1397
  %1430 = vst [vmem:[%s7 + $0x68] sm:$0xff] %v1398
  %1431 = vst [vmem:[%s7 + $0x70] sm:$0xff] %v1399
  %1432 = vst [vmem:[%s7 + $0x78] sm:$0xff] %v1400
  %1433 = vst [vmem:[%s7 + $0x80] sm:$0xff] %v1401
  %1434 = vst [vmem:[%s7 + $0x88] sm:$0xff] %v1402
  %1435 = vst [vmem:[%s7 + $0x90] sm:$0xff] %v1403
  %1436 = vst [vmem:[%s7 + $0x98] sm:$0xff] %v1404
  %1437 = vst [vmem:[%s7 + $0xa0] sm:$0xff] %v1405
  %1438 = vst [vmem:[%s7 + $0xa8] sm:$0xff] %v1406
  %1439 = vst [vmem:[%s7 + $0xb0] sm:$0xff] %v1407
  %1440 = vst [vmem:[%s7 + $0xb8] sm:$0xff] %v1408
  %1441 = vst [vmem:[%s7 + $0xc0] sm:$0xff] %v1409
  %1442 = vst [vmem:[%s7 + $0xc8] sm:$0xff] %v1410
  %1443 = vst [vmem:[%s7 + $0xd0] sm:$0xff] %v1411
  %1444 = vst [vmem:[%s7 + $0xd8] sm:$0xff] %v1412
  %1445 = vst [vmem:[%s7 + $0xe0] sm:$0xff] %v1413
  %1446 = vst [vmem:[%s7 + $0xe8] sm:$0xff] %v1414
  %1447 = vst [vmem:[%s7 + $0xf0] sm:$0xff] %v1415
  %1448 = vst [vmem:[%s7 + $0xf8] sm:$0xff] %v1416
  // Predicated region
  $region30: #{stardist_forward.1} parent=0 // pred_check
    _
  $region31: #{stardist_forward.1} parent=0 // pred_check_branch
    %1450 = sbr.rel (0) target = $region33
  $region32: #{stardist_forward.1} parent=0 // pred_region
    _
  $region33: #{stardist_forward.1} parent=0 // pred_fallthru
    _
  // Predicated region
  $region34: #{stardist_forward.1} parent=0 // pred_check
    _
  $region35: #{stardist_forward.1} parent=0 // pred_check_branch
    %1452 = sbr.rel (0) target = $region37
  $region36: #{stardist_forward.1} parent=0 // pred_region
    _
  $region37: #{stardist_forward.1} parent=0 // pred_fallthru
    _

</llo_original>
